<compile_context>
chip_gen: v7x
topology: tpu7x:2x2x1
jax: 0.10.0
libtpu: 0.0.40
codegen_flags: <defaults>
</compile_context>

<pallas_src>
import functools

import jax
import jax.numpy as jnp
from jax.experimental import pallas as pl
from jax.experimental.pallas import tpu as pltpu

NEG_SLOPE = 0.2        # negative_slope of LeakyReLU (module default)
MASK_VALUE = -1e30     # additive mask folded into ee; exp underflows to exactly 0


def _vmem_limit_bytes():
    """Generation-aware VMEM budget: ~60% of per-core capacity, conservative fallback."""
    cap = None
    try:
        cap = getattr(pltpu.get_tpu_info(), "vmem_capacity_bytes", None)
    except Exception:
        cap = None
    if not cap:
        cap = 64 * 1024 * 1024          # assume v7x's 64 MiB / TensorCore when unknown
    return int(cap * 0.6)


# ---------------------------------------------------------------------------
# Kernel 1: node projection for all heads + fused attn_l/attn_r reductions,
# one matmul and one lane-dense store per node tile.
# ---------------------------------------------------------------------------
def _proj_kernel(feat_ref, wcat_ref, out_ref):
    out_ref[...] = jnp.dot(feat_ref[...], wcat_ref[...],
                           preferred_element_type=jnp.float32)   # (T, H*F + 2H)


# ---------------------------------------------------------------------------
# Kernel 2: masked edge-softmax + aggregation, one dst-row tile per grid step.
# ---------------------------------------------------------------------------
def _attn_kernel(fsrc_bd_ref, el_ref, er_ref, ee_ref, rst_ref, a_ref, *, agg_dtype):
    # fsrc_bd_ref: (H*N_src, H*F)  block-diagonal projected features (resident, bf16)
    # el_ref:      (H, 1, N_src)   source term (resident, f32)
    # er_ref:      (H, TILE, 1)    destination term (f32)
    # ee_ref:      (H, TILE, N_src) edge term with adjacency mask folded in (bf16)
    # rst_ref:     (TILE, H*F)     lane-dense output slab (f32)
    # a_ref:       (H, TILE, N_src) dense attention output (bf16)
    logits = er_ref[...] + el_ref[...] + ee_ref[...].astype(jnp.float32)   # (H, T, N) f32
    e = jnp.where(logits >= 0, logits, NEG_SLOPE * logits)                 # LeakyReLU
    m = jnp.max(e, axis=-1, keepdims=True)                                 # (H, T, 1)
    p = jnp.exp(e - m)                                                     # masked -> exactly 0
    s = jnp.sum(p, axis=-1, keepdims=True)
    inv_s = pl.reciprocal(s, approx=True)                                  # EUP
    # Guard: dst rows with zero in-degree (m stuck at the leaky-relu'd mask) get a = 0.
    a = jnp.where(m > jnp.float32(-1e29), p * inv_s, jnp.float32(0.0))
    a_ref[...] = a.astype(a_ref.dtype)

    # Pack all heads into ONE wide MXU matmul: (T, H*N) @ (H*N, H*F) block-diagonal,
    # then a single lane-dense store of the whole (T, H*F) slab.
    num_heads = a.shape[0]
    a_flat = jnp.concatenate([a[h] for h in range(num_heads)], axis=-1).astype(agg_dtype)
    rst_ref[...] = jnp.dot(a_flat, fsrc_bd_ref[...],
                           preferred_element_type=jnp.float32).astype(rst_ref.dtype)


# ---------------------------------------------------------------------------
# Tile selection helpers.
# ---------------------------------------------------------------------------
def _round_down_to_aligned_divisor(n, cap, align=8):
    """Largest multiple of `align` dividing n that is <= cap; falls back to n (full block)."""
    t = min(n, max(cap, align))
    t -= t % align
    while t >= align:
        if n % t == 0:
            return t
        t -= align
    return n


def _choose_proj_tile(n_nodes, in_feats, out_cols, *, vmem_limit, min_grid=4):
    resident = 2 * 4 * in_feats * out_cols                    # double-buffered W_cat
    per_row = 2 * 4 * (in_feats + out_cols) + 4 * out_cols    # streamed blocks + matmul result
    cap = max(8, (int(vmem_limit * 0.8) - resident) // max(per_row, 1))
    if n_nodes >= 8 * min_grid:
        cap = min(cap, n_nodes // min_grid)                   # keep >= min_grid steps
    return _round_down_to_aligned_divisor(n_nodes, cap, align=8)


def _choose_dst_tile(n_dst, n_src, num_heads, hf, *, vmem_limit,
                     ee_bytes, a_bytes, agg_bytes, min_grid=4):
    # Resident constant-index blocks are double-buffered by the pipeline (fsrc_bd, el).
    resident = 2 * (num_heads * n_src * hf * agg_bytes + num_heads * n_src * 4)
    # Per-dst-row bytes: streamed blocks (double-buffered) + live f32 softmax
    # temporaries + the flattened attention fed to the MXU (previously undercounted).
    per_row = (2 * num_heads * n_src * (ee_bytes + a_bytes)   # ee in + a out
               + 2 * (hf * 4 + num_heads * 4)                 # rst out + er in
               + 3 * num_heads * n_src * 4                    # logits / p / a (f32)
               + num_heads * n_src * agg_bytes                # a_flat
               + hf * 4)                                      # matmul result
    cap = max(8, (int(vmem_limit * 0.8) - resident) // max(per_row, 1))
    if n_dst >= 16 * min_grid:
        cap = min(cap, n_dst // min_grid)                     # pipelining + megacore depth
    return _round_down_to_aligned_divisor(n_dst, cap, align=16)   # bf16 blocks: sublane x16


# ---------------------------------------------------------------------------
# Wrapper.
# ---------------------------------------------------------------------------
def my_gat_conv_forward(feat, w_fc, attn_l, attn_r, w_e, attn_e, emb_dense, adj,
                        *, a_dtype=jnp.bfloat16, ee_dtype=jnp.bfloat16,
                        agg_dtype=jnp.bfloat16):
    """Forward pass of myGATConv on a densely represented graph.

    feat:      (N, Din)      node features
    w_fc:      (Din, H*F)    fc weight (already transposed: y = x @ w_fc)
    attn_l/r:  (H, F)        attention vectors
    w_e:       (De, H*De)    fc_e weight (transposed)
    attn_e:    (H, De)
    emb_dense: (N, N, De)    edge-type embeddings on the dense [dst, src] grid
    adj:       (N, N)        adjacency mask [dst, src] (1.0 where an edge exists)
    a_dtype / ee_dtype / agg_dtype: bf16 defaults (perf review); set jnp.float32 for
    bit-exact module numerics at ~2x the HBM traffic / MXU passes of kernel 2.

    returns rst (N, H, F) == graph.dstdata['ft'],  a_dense (H, N, N) [0 at non-edges]
    """
    n_nodes, in_feats = feat.shape
    num_heads, out_feats = attn_l.shape
    hf = num_heads * out_feats
    edge_feats = attn_e.shape[1]
    f32 = jnp.float32
    vmem_limit = _vmem_limit_bytes()

    # ---- parameter folding (wrapper glue) ----
    eye = jnp.eye(num_heads, dtype=f32)
    al_bd = (attn_l.astype(f32)[:, :, None] * eye[:, None, :]).reshape(hf, num_heads)
    ar_bd = (attn_r.astype(f32)[:, :, None] * eye[:, None, :]).reshape(hf, num_heads)
    alr = jnp.concatenate([al_bd, ar_bd], axis=1)                          # (H*F, 2H)
    # Fold the el/er reductions into the projection weight (one matmul, one store).
    w_cat = jnp.concatenate([w_fc.astype(f32), w_fc.astype(f32) @ alr], axis=1)   # (Din, H*F+2H)

    # Fold fc_e with attn_e:  ve_all[k, h] = sum_d w_e[k, h*De + d] * attn_e[h, d]
    ve_all = jnp.einsum('khd,hd->kh',
                        w_e.astype(f32).reshape(edge_feats, num_heads, edge_feats),
                        attn_e.astype(f32))                                # (De, H)
    # Hoisted edge-score term (one matmul for all heads, default MXU precision), with
    # the adjacency mask folded in so kernel 2 has no adj stream and no mask select,
    # streamed to the kernel in bf16 (logits are re-summed in f32 inside the kernel).
    ee3 = jnp.einsum('dse,eh->hds', emb_dense.astype(f32), ve_all)         # (H, N, N)
    ee3 = (ee3 + MASK_VALUE * (1.0 - adj.astype(f32))[None]).astype(ee_dtype)

    # ---- Kernel 1: projection (lane-dense, all heads + el/er at once) ----
    out_cols = hf + 2 * num_heads
    tile_n = _choose_proj_tile(n_nodes, in_feats, out_cols, vmem_limit=vmem_limit)
    slab = pl.pallas_call(
        _proj_kernel,
        out_shape=jax.ShapeDtypeStruct((n_nodes, out_cols), f32),
        grid=(n_nodes // tile_n,),
        in_specs=[
            pl.BlockSpec((tile_n, in_feats), lambda i: (i, 0)),
            pl.BlockSpec((in_feats, out_cols), lambda i: (0, 0)),     # resident weight
        ],
        out_specs=pl.BlockSpec((tile_n, out_cols), lambda i: (i, 0)),
        compiler_params=pltpu.CompilerParams(
            dimension_semantics=("parallel",),
            vmem_limit_bytes=vmem_limit),
    )(feat.astype(f32), w_cat)

    fsrc_all = slab[:, :hf]                                                 # (N, H*F)
    el3 = slab[:, hf:hf + num_heads].T.reshape(num_heads, 1, n_nodes)       # (H, 1, N_src)
    er3 = slab[:, hf + num_heads:].T.reshape(num_heads, n_nodes, 1)         # (H, N_dst, 1)

    # Block-diagonal fsrc so the per-head aggregations become ONE wide MXU matmul.
    fsrc3 = fsrc_all.reshape(n_nodes, num_heads, out_feats)
    fsrc_bd = (jnp.transpose(fsrc3, (1, 0, 2))[:, :, None, :]
               * eye[:, None, :, None]).reshape(num_heads * n_nodes, hf).astype(agg_dtype)

    # ---- Kernel 2: masked edge-softmax + aggregation, tiled over dst rows ----
    tile_dst = _choose_dst_tile(n_nodes, n_nodes, num_heads, hf,
                                vmem_limit=vmem_limit,
                                ee_bytes=jnp.dtype(ee_dtype).itemsize,
                                a_bytes=jnp.dtype(a_dtype).itemsize,
                                agg_bytes=jnp.dtype(agg_dtype).itemsize)
    kernel = functools.partial(_attn_kernel, agg_dtype=agg_dtype)
    rst_slab, a3 = pl.pallas_call(
        kernel,
        out_shape=(jax.ShapeDtypeStruct((n_nodes, hf), f32),
                   jax.ShapeDtypeStruct((num_heads, n_nodes, n_nodes), a_dtype)),
        grid=(n_nodes // tile_dst,),
        in_specs=[
            pl.BlockSpec((num_heads * n_nodes, hf), lambda t: (0, 0)),           # fsrc_bd (resident)
            pl.BlockSpec((num_heads, 1, n_nodes), lambda t: (0, 0, 0)),          # el     (resident)
            pl.BlockSpec((num_heads, tile_dst, 1), lambda t: (0, t, 0)),         # er
            pl.BlockSpec((num_heads, tile_dst, n_nodes), lambda t: (0, t, 0)),   # ee (bf16, mask folded)
        ],
        out_specs=(
            pl.BlockSpec((tile_dst, hf), lambda t: (t, 0)),                      # rst (lane-dense)
            pl.BlockSpec((num_heads, tile_dst, n_nodes), lambda t: (0, t, 0)),   # a   (bf16)
        ),
        compiler_params=pltpu.CompilerParams(
            dimension_semantics=("parallel",),
            vmem_limit_bytes=vmem_limit),
    )(fsrc_bd, el3, er3, ee3)

    rst = rst_slab.reshape(n_nodes, num_heads, out_feats)
    return rst, a3


if __name__ == "__main__":
    # Small shapes consistent with the module:
    N, Din, F, H, De, T = 128, 16, 8, 4, 8, 5   # nodes, in_feats, out_feats, heads, edge_feats, num_etypes

    # Graph: self-loops (in-degree >= 1) + a ring. Edge arrays are (src, dst, etype).
    loop = jnp.arange(N, dtype=jnp.int32)
    src = jnp.concatenate([loop, loop])
    dst = jnp.concatenate([loop, (loop + 1) % N])
    E = int(src.shape[0])
    etype = (jnp.arange(E, dtype=jnp.int32) % T)

    # Deterministic parameter init (xavier_normal-like with relu gain; Embedding ~ N(0,1)).
    key = jax.random.PRNGKey(0)
    k = jax.random.split(key, 7)
    gain = jnp.sqrt(2.0)

    def xavier(kk, shape, fan_in, fan_out):
        std = gain * jnp.sqrt(2.0 / (fan_in + fan_out))
        return (std * jax.random.normal(kk, shape)).astype(jnp.float32)

    # Linear weights stored already transposed (so y = x @ W).
    Wfc = xavier(k[0], (Din, H * F), Din, H * F)          # fc:   Linear(Din, H*F)
    W_e = xavier(k[1], (De, H * De), De, H * De)          # fc_e: Linear(De, H*De)
    attn_l = xavier(k[2], (H, F), H * F, F)
    attn_r = xavier(k[3], (H, F), H * F, F)
    attn_e = xavier(k[4], (H, De), H * De, De)
    emb_table = jax.random.normal(k[5], (T, De), dtype=jnp.float32)  # edge_emb
    feat = jax.random.normal(k[6], (N, Din), dtype=jnp.float32)

    # ---- glue: graph densification ----
    adj = jnp.zeros((N, N), jnp.float32).at[dst, src].set(1.0)       # [dst, src]
    etype_dense = jnp.zeros((N, N), jnp.int32).at[dst, src].set(etype)
    emb_dense = emb_table[etype_dense]                               # (N, N, De)

    # ---- run kernels (bf16 attention / edge / aggregation streams by default) ----
    rst, a_dense = my_gat_conv_forward(feat, Wfc, attn_l, attn_r, W_e, attn_e,
                                       emb_dense, adj)
    # Cast to f32 only when extracting the per-edge attention (== graph.edata['a']).
    a_edge = jnp.transpose(a_dense[:, dst, src].astype(jnp.float32), (1, 0))[..., None]  # (E, H, 1)
    jax.block_until_ready((rst, a_edge))

    # ---- pure-JAX f32 reference check (tolerances loosened for the bf16 streams) ----
    fsrc_ref = (feat @ Wfc).reshape(N, H, F)
    e_proj = (emb_table[etype] @ W_e).reshape(E, H, De)
    ee_ref = jnp.sum(e_proj * attn_e[None], axis=-1)                 # (E, H)
    el_ref = jnp.sum(fsrc_ref * attn_l[None], axis=-1)               # (N, H)
    er_ref = jnp.sum(fsrc_ref * attn_r[None], axis=-1)
    e_ref = el_ref[src] + er_ref[dst] + ee_ref
    e_ref = jnp.where(e_ref >= 0, e_ref, NEG_SLOPE * e_ref)
    m_ref = jax.ops.segment_max(e_ref, dst, num_segments=N)
    p_ref = jnp.exp(e_ref - m_ref[dst])
    s_ref = jax.ops.segment_sum(p_ref, dst, num_segments=N)
    a_ref = p_ref / s_ref[dst]
    rst_ref = jax.ops.segment_sum(fsrc_ref[src] * a_ref[..., None], dst, num_segments=N)

    rst_err = float(jnp.max(jnp.abs(rst - rst_ref)) / jnp.max(jnp.abs(rst_ref)))
    a_err = float(jnp.max(jnp.abs(a_edge[..., 0] - a_ref)))
    assert rst_err < 5e-2, f"rst mismatch: max scaled error {rst_err}"
    assert a_err < 5e-2, f"attention mismatch: max abs error {a_err}"

    print("KERNEL_OK")
</pallas_src>

<mosaic_0001>
module attributes {stable_mosaic.version = 11 : i64} {
  func.func @_proj_kernel(%arg0: i32, %arg1: memref<32x16xf32, #tpu.memory_space<vmem>>, %arg2: memref<16x40xf32, #tpu.memory_space<vmem>>, %arg3: memref<32x40xf32, #tpu.memory_space<vmem>>) attributes {dimension_semantics = [#tpu.dimension_semantics<parallel>], iteration_bounds = array<i64: 4>, scalar_prefetch = 0 : i64, scratch_operands = 0 : i64, tpu.core_type = #tpu.core_type<tc>, window_params = [{transform_indices = @transform_0, window_bounds = array<i64: 32, 16>}, {pipeline_mode = #tpu.pipeline_mode<synchronous>, transform_indices = @transform_1, window_bounds = array<i64: 16, 40>}, {transform_indices = @transform_2, window_bounds = array<i64: 32, 40>}]} {
    %c0 = arith.constant 0 : index
    %c0_0 = arith.constant 0 : index
    %0 = vector.load %arg1[%c0, %c0_0] : memref<32x16xf32, #tpu.memory_space<vmem>>, vector<32x16xf32>
    %c0_1 = arith.constant 0 : index
    %c0_2 = arith.constant 0 : index
    %1 = vector.load %arg2[%c0_1, %c0_2] : memref<16x40xf32, #tpu.memory_space<vmem>>, vector<16x40xf32>
    %cst = arith.constant dense<0.000000e+00> : vector<32x40xf32>
    %2 = tpu.matmul %0, %1, %cst {dimension_numbers = #tpu.dot_dimension_numbers<[1], [0], [0], [1], [0, 0, 1, 1], [], []>} : vector<32x16xf32>, vector<16x40xf32>, vector<32x40xf32> -> vector<32x40xf32>
    %c0_3 = arith.constant 0 : index
    %c0_4 = arith.constant 0 : index
    %3 = vector.load %arg3[%c0_3, %c0_4] : memref<32x40xf32, #tpu.memory_space<vmem>>, vector<32x40xf32>
    tpu.vector_store %arg3[%c0_3, %c0_4], %2 {strides = array<i32>} : memref<32x40xf32, #tpu.memory_space<vmem>>, vector<32x40xf32>,
    return
  }
  func.func @transform_0(%arg0: i32) -> (i32, i32) {
    %c0_i32 = arith.constant 0 : i32
    %c0_i32_0 = arith.constant 0 : i32
    return %arg0, %c0_i32 : i32, i32
  }
  func.func @transform_1(%arg0: i32) -> (i32, i32) {
    %c0_i32 = arith.constant 0 : i32
    %c0_i32_0 = arith.constant 0 : i32
    %c0_i32_1 = arith.constant 0 : i32
    return %c0_i32, %c0_i32_0 : i32, i32
  }
  func.func @transform_2(%arg0: i32) -> (i32, i32) {
    %c0_i32 = arith.constant 0 : i32
    %c0_i32_0 = arith.constant 0 : i32
    return %arg0, %c0_i32 : i32, i32
  }
}

</mosaic_0001>

<llo_original>
// kernel: tpu_custom_call.1
$region0: #{tpu_custom_call.1}
  #allocation0 [shape = 'u32[]', space=smem, size = 0x4, offset = 0x4, fixed_abs, tag = 'smem constant byte address 0x4 - core index']
  #allocation1 [shape = 'u32[144,128]{1,0:T(1,128)}', space=vmem, size = 0x12000, scoped, tag = 'internal scratch']
  %s0 = inlined_call_operand.vmem [shape: f32[128,16], index: 0, kind: input, shape index: {}]
  %s1 = inlined_call_operand.vmem [shape: f32[16,40], index: 1, kind: input, shape index: {}]
  %s2 = inlined_call_operand.vmem [shape: f32[128,40], index: 2, kind: output, shape index: {}]
  %s3 = sld [smem:[#allocation0]]
  $region41: #{tpu_custom_call.1} parent=0
    _
  %s5 = ssub.s32 1, %s3
  %s6 = scalar_select 0, %s5, %s3
  loop: start=0, step=1, limit=6
  $region2: #{tpu_custom_call.1} parent=0 // loop_pre_header
    _
  $region3: #{tpu_custom_call.1} parent=0 // loop_header
    %s8 = sphi 0, %s12
    %p9 = scmp.ge.s32.totalorder %s8, 6
    %s18 = sphi 0, %s20
    %s21 = sphi 0, %s18
    %s22 = sphi 0, %s21
    %s38 = sphi 0, %s22
    %s42 = sphi 0, %s42
    %s44 = sphi 0, %s42
    %s45 = sphi 0, %s44
    %s59 = sphi 0, %s45
    %s65 = sphi 0, %s67
    %s68 = sphi 0, %s65
    %s69 = sphi 0, %s68
    %s85 = sphi 0, %s69
  $region4: #{tpu_custom_call.1} parent=0 // loop_header_branch
    %11 = sbr.rel (%p9) target = $region8
  $region5: #{tpu_custom_call.1} parent=0 // loop_body
    %s13 = ssub.s32 %s8, 1
    %s14 = ssub.s32 %s8, 2
    %s15 = sadd.s32 %s8, 1
    %s16 = ssub.s32 %s8, %s15
    %p17 = scmp.eq.s32.totalorder %s16, 0
    %s19 = sadd.s32 %s18, 1
    %s20 = scalar_select %p17, %s18, %s19
    %p23 = pneg %p17
    %p24 = scmp.eq.s32.totalorder %s8, 3
    %p25 = por %p23, %p24
    %p26 = scmp.ne.s32.totalorder %s18, %s21
    %p27 = scmp.eq.s32.totalorder %s8, 0
    %p28 = por %p26, %p27
    %p29 = scmp.ne.s32.totalorder %s18, %s21
    %p30 = scmp.eq.s32.totalorder %s13, 3
    %p31 = por %p29, %p30
    %p32 = scmp.ne.s32.totalorder %s21, %s22
    %p33 = scmp.eq.s32.totalorder %s13, 0
    %p34 = por %p32, %p33
    %p35 = scmp.ne.s32.totalorder %s21, %s22
    %p36 = scmp.eq.s32.totalorder %s14, 3
    %p37 = por %p35, %p36
    %p39 = scmp.ne.s32.totalorder %s22, %s38
    %p40 = scmp.eq.s32.totalorder %s14, 0
    %p41 = por %p39, %p40
    %s43 = sadd.s32 %s42, 1
    %p46 = scmp.eq.s32.totalorder %s8, 3
    %p47 = scmp.ne.s32.totalorder %s42, %s44
    %p48 = scmp.eq.s32.totalorder %s8, 0
    %p49 = por %p47, %p48
    %p50 = scmp.ne.s32.totalorder %s42, %s44
    %p51 = scmp.eq.s32.totalorder %s13, 3
    %p52 = por %p50, %p51
    %p53 = scmp.ne.s32.totalorder %s44, %s45
    %p54 = scmp.eq.s32.totalorder %s13, 0
    %p55 = por %p53, %p54
    %p56 = scmp.ne.s32.totalorder %s44, %s45
    %p57 = scmp.eq.s32.totalorder %s14, 3
    %p58 = por %p56, %p57
    %p60 = scmp.ne.s32.totalorder %s45, %s59
    %p61 = scmp.eq.s32.totalorder %s14, 0
    %p62 = por %p60, %p61
    %s63 = ssub.s32 %s8, %s15
    %p64 = scmp.eq.s32.totalorder %s63, 0
    %s66 = sadd.s32 %s65, 1
    %s67 = scalar_select %p64, %s65, %s66
    %p70 = pneg %p64
    %p71 = scmp.eq.s32.totalorder %s8, 3
    %p72 = por %p70, %p71
    %p73 = scmp.ne.s32.totalorder %s65, %s68
    %p74 = scmp.eq.s32.totalorder %s8, 0
    %p75 = por %p73, %p74
    %p76 = scmp.ne.s32.totalorder %s65, %s68
    %p77 = scmp.eq.s32.totalorder %s13, 3
    %p78 = por %p76, %p77
    %p79 = scmp.ne.s32.totalorder %s68, %s69
    %p80 = scmp.eq.s32.totalorder %s13, 0
    %p81 = por %p79, %p80
    %p82 = scmp.ne.s32.totalorder %s68, %s69
    %p83 = scmp.eq.s32.totalorder %s14, 3
    %p84 = por %p82, %p83
    %p86 = scmp.ne.s32.totalorder %s69, %s85
    %p87 = scmp.eq.s32.totalorder %s14, 0
    %p88 = por %p86, %p87
    %p89 = scmp.le.s32.totalorder 1, %s8
    %p90 = scmp.lt.s32.totalorder %s8, 5
    %p91 = pnand %p89, %p90
    %p92 = pneg %p91
    // Predicated region
    $region9: #{tpu_custom_call.1} parent=5 // pred_check
      _
    $region10: #{tpu_custom_call.1} parent=5 // pred_check_branch
      %94 = sbr.rel (%p91) target = $region12
    $region11: #{tpu_custom_call.1} parent=5 // pred_region
      %s95 = ssub.s32 %s8, 1
      // Predicated region
      $region13: #{tpu_custom_call.1} parent=11 // pred_check
        %p96 = pneg %p55
      $region14: #{tpu_custom_call.1} parent=11 // pred_check_branch
        %98 = sbr.rel (%p96) target = $region16
      $region15: #{tpu_custom_call.1} parent=11 // pred_region
        _
      $region16: #{tpu_custom_call.1} parent=11 // pred_fallthru
        _
    $region12: #{tpu_custom_call.1} parent=5 // pred_fallthru
      _
    %p99 = scmp.lt.s32.totalorder %s8, 4
    // Predicated region
    $region17: #{tpu_custom_call.1} parent=5 // pred_check
      %p100 = pneg %p99
    $region18: #{tpu_custom_call.1} parent=5 // pred_check_branch
      %102 = sbr.rel (%p100) target = $region20
    $region19: #{tpu_custom_call.1} parent=5 // pred_region
      // Predicated region
      $region21: #{tpu_custom_call.1} parent=19 // pred_check
        %p103 = pneg %p28
      $region22: #{tpu_custom_call.1} parent=19 // pred_check_branch
        %105 = sbr.rel (%p103) target = $region24
      $region23: #{tpu_custom_call.1} parent=19 // pred_region
        %s106 = smul.u32 4, %s8
        %p107 = scmp.lt.s32.totalorder %s106, 15
        %s108 = scalar_select %p107, %s106, 15
        %s109 = smul.addr %s108, 8
        %s110 = scalar_lea.vmem %s0, %s109
        %s111 = smul.u32 4, %s8
      $region24: #{tpu_custom_call.1} parent=19 // pred_fallthru
        _
    $region20: #{tpu_custom_call.1} parent=5 // pred_fallthru
      _
    %p112 = scmp.le.s32.totalorder 1, %s8
    %p113 = scmp.lt.s32.totalorder %s8, 5
    %p114 = pnand %p112, %p113
    %p115 = pneg %p114
    // Predicated region
    $region25: #{tpu_custom_call.1} parent=5 // pred_check
      _
    $region26: #{tpu_custom_call.1} parent=5 // pred_check_branch
      %117 = sbr.rel (%p114) target = $region28
    $region27: #{tpu_custom_call.1} parent=5 // pred_region
      %s118 = ssub.s32 %s8, 1
      %s119 = smul.u32 4, %s13
      %p120 = scmp.lt.s32.totalorder %s119, 15
      %s121 = scalar_select %p120, %s119, 15
      %s122 = smul.addr %s121, 8
      %s123 = scalar_lea.vmem %s0, %s122
      %p124 = pneg %p34
      %p125 = pneg %p31
      %p126 = pneg %p55
      %p127 = pneg %p52
      %p128 = pneg %p81
      %p129 = pneg %p78
      %s130 = smul.u32 4, %s13
      %p131 = scmp.lt.s32.totalorder %s130, 15
      %s132 = scalar_select %p131, %s130, 15
      %s133 = smul.addr %s132, 8
      %s134 = scalar_lea.vmem %s2, %s133
      %s135 = smul.u32 4, %s13
      %p136 = scmp.lt.s32.totalorder %s135, 15
      %s137 = scalar_select %p136, %s135, 15
      %s138 = smul.addr %s137, 8
      %s139 = scalar_lea.vmem %s0, %s138
      %s140 = smul.u32 4, %s13
      %s141 = smul.u32 4, %s13
      %p142 = scmp.lt.s32.totalorder %s141, 15
      %s143 = scalar_select %p142, %s141, 15
      %s144 = smul.addr %s143, 8
      %s145 = scalar_lea.vmem %s2, %s144
      %s146 = smul.u32 4, %s13
      %v147 = vld [vmem:[%s139] sm:$0xff]
      %v148 = vld [vmem:[%s139 + $0x8] sm:$0xff]
      %v149 = vld [vmem:[%s139 + $0x10] sm:$0xff]
      %v150 = vld [vmem:[%s139 + $0x18] sm:$0xff]
      %v151 = vld [vmem:[%s1] sm:$0xff]
      %v152 = vld [vmem:[%s1 + $0x8] sm:$0xff]
      %vm153 = vcmask 130048
      %v155 = vsel %vm153, %v147, 0
      %v158 = vsel %vm153, %v148, 0
      %v161 = vsel %vm153, %v149, 0
      %v164 = vsel %vm153, %v150, 0
      %166 = vmatprep.subr.mxu0 0.0
      %167 = vmatpush1.msra.mxu0 %v151
      %168 = vmatprep.subr.mxu0 0.0
      %169 = vmatpush1.msra.mxu0 %v152
      %170 = vmatprep.subr.mxu0 0.0
      %171 = vmatpush1.msra.mxu0 0.0
      %172 = vmatprep.subr.mxu0 0.0
      %173 = vmatpush1.msra.mxu0 0.0
      %174 = vmatprep.subr.mxu0 0.0
      %175 = vmatpush1.msra.mxu0 0.0
      %176 = vmatprep.subr.mxu0 0.0
      %177 = vmatpush1.msra.mxu0 0.0
      %178 = vmatprep.subr.mxu0 0.0
      %179 = vmatpush1.msra.mxu0 0.0
      %180 = vmatprep.subr.mxu0 0.0
      %181 = vmatpush1.msra.mxu0 0.0
      %182 = vmatprep.subr.mxu0 0.0
      %183 = vmatpush1.msra.mxu0 0.0
      %184 = vmatprep.subr.mxu0 0.0
      %185 = vmatpush1.msra.mxu0 0.0
      %186 = vmatprep.subr.mxu0 0.0
      %187 = vmatpush1.msra.mxu0 0.0
      %188 = vmatprep.subr.mxu0 0.0
      %189 = vmatpush1.msra.mxu0 0.0
      %190 = vmatprep.subr.mxu0 0.0
      %191 = vmatpush1.msra.mxu0 0.0
      %192 = vmatprep.subr.mxu0 0.0
      %193 = vmatpush1.msra.mxu0 0.0
      %194 = vmatprep.subr.mxu0 0.0
      %195 = vmatpush1.msra.mxu0 0.0
      %196 = vmatprep.subr.mxu0 0.0
      %197 = vmatpush1.msra.mxu0 0.0
      %198 = vmatprep.subr.mxu0 0.0
      %199 = vmatpush1.msra.mxu0 0.0
      %200 = vmatprep.subr.mxu0 0.0
      %201 = vmatpush1.msra.mxu0 0.0
      %202 = vmatprep.subr.mxu0 0.0
      %203 = vmatpush1.msra.mxu0 0.0
      %204 = vmatprep.subr.mxu0 0.0
      %205 = vmatpush1.msra.mxu0 0.0
      %206 = vmatprep.subr.mxu0 0.0
      %207 = vmatpush1.msra.mxu0 0.0
      %208 = vmatprep.subr.mxu0 0.0
      %209 = vmatpush1.msra.mxu0 0.0
      %210 = vmatprep.subr.mxu0 0.0
      %211 = vmatpush1.msra.mxu0 0.0
      %212 = vmatprep.subr.mxu0 0.0
      %213 = vmatpush1.msra.mxu0 0.0
      %214 = vmatprep.subr.mxu0 0.0
      %215 = vmatpush1.msra.mxu0 0.0
      %216 = vmatprep.subr.mxu0 0.0
      %217 = vmatpush1.msra.mxu0 0.0
      %218 = vmatprep.subr.mxu0 0.0
      %219 = vmatpush1.msra.mxu0 0.0
      %220 = vmatprep.subr.mxu0 0.0
      %221 = vmatpush1.msra.mxu0 0.0
      %222 = vmatprep.subr.mxu0 0.0
      %223 = vmatpush1.msra.mxu0 0.0
      %224 = vmatprep.subr.mxu0 0.0
      %225 = vmatpush1.msra.mxu0 0.0
      %226 = vmatprep.subr.mxu0 0.0
      %227 = vmatpush1.msra.mxu0 0.0
      %228 = vmatprep.subr.mxu0 0.0
      %229 = vmatpush1.msra.mxu0 0.0
      %230 = vmatprep.mubr.f32.mxu0 0.0
      %231 = vmatmul.mubr.f32.gmra.mrb[0].mxu0 %v155
      %v232 = vpop.f32.mrb[0].mxu0
      %v233 = vadd.f32 0.0, %v232
      %v234 = vpop.f32.mrb[0].mxu0
      %235 = vmatprep.mubr.f32.mxu0 0.0
      %236 = vmatmul.mubr.f32.gmra.mrb[0].mxu0 %v158
      %v237 = vpop.f32.mrb[0].mxu0
      %v238 = vadd.f32 0.0, %v237
      %v239 = vpop.f32.mrb[0].mxu0
      %240 = vmatprep.mubr.f32.mxu0 0.0
      %241 = vmatmul.mubr.f32.gmra.mrb[0].mxu0 %v161
      %v242 = vpop.f32.mrb[0].mxu0
      %v243 = vadd.f32 0.0, %v242
      %v244 = vpop.f32.mrb[0].mxu0
      %245 = vmatprep.mubr.f32.mxu0 0.0
      %246 = vmatmul.mubr.f32.gmra.mrb[0].mxu0 %v164
      %v247 = vpop.f32.mrb[0].mxu0
      %v248 = vadd.f32 0.0, %v247
      %v249 = vpop.f32.mrb[0].mxu0
      %250 = vdwg.mxu0
      %vm251 = vcmask 326656
      %252 = vst.msk [vmem:[%s145] sm:$0xff] %vm251, %v233
      %253 = vst.msk [vmem:[%s145 + $0x8] sm:$0xff] %vm251, %v238
      %254 = vst.msk [vmem:[%s145 + $0x10] sm:$0xff] %vm251, %v243
      %255 = vst.msk [vmem:[%s145 + $0x18] sm:$0xff] %vm251, %v248
      %s256 = smul.u32 4, %s13
      %p257 = scmp.lt.s32.totalorder %s256, 15
      %s258 = scalar_select %p257, %s256, 15
      %s259 = smul.addr %s258, 8
      %s260 = scalar_lea.vmem %s2, %s259
      // Predicated region
      $region29: #{tpu_custom_call.1} parent=27 // pred_check
        %p261 = pneg %p78
      $region30: #{tpu_custom_call.1} parent=27 // pred_check_branch
        %263 = sbr.rel (%p261) target = $region32
      $region31: #{tpu_custom_call.1} parent=27 // pred_region
        %s264 = smul.u32 4, %s13
      $region32: #{tpu_custom_call.1} parent=27 // pred_fallthru
        _
    $region28: #{tpu_custom_call.1} parent=5 // pred_fallthru
      _
    %p265 = scmp.le.s32.totalorder 2, %s8
    // Predicated region
    $region33: #{tpu_custom_call.1} parent=5 // pred_check
      %p266 = pneg %p265
    $region34: #{tpu_custom_call.1} parent=5 // pred_check_branch
      %268 = sbr.rel (%p266) target = $region36
    $region35: #{tpu_custom_call.1} parent=5 // pred_region
      %s269 = ssub.s32 %s8, 2
      // Predicated region
      $region37: #{tpu_custom_call.1} parent=35 // pred_check
        %p270 = pneg %p84
      $region38: #{tpu_custom_call.1} parent=35 // pred_check_branch
        %272 = sbr.rel (%p270) target = $region40
      $region39: #{tpu_custom_call.1} parent=35 // pred_region
        %s273 = smul.u32 4, %s14
        %p274 = scmp.lt.s32.totalorder %s273, 15
        %s275 = scalar_select %p274, %s273, 15
        %s276 = smul.addr %s275, 8
        %s277 = scalar_lea.vmem %s2, %s276
      $region40: #{tpu_custom_call.1} parent=35 // pred_fallthru
        _
    $region36: #{tpu_custom_call.1} parent=5 // pred_fallthru
      _
  $region6: #{tpu_custom_call.1} parent=0 // loop_footer
    %s12 = sadd.s32 1, %s8
  $region7: #{tpu_custom_call.1} parent=0 // loop_footer_branch
    %7 = sbr.rel target = $region3
  $region8: #{tpu_custom_call.1} parent=0 // loop_exit
    _

</llo_original>
